<compile_context>
chip_gen: v6e
topology: v6e:2x2x1
jax: 0.10.0
libtpu: 0.0.40
codegen_flags: <defaults>
</compile_context>

<pallas_src>
import math

import jax
import jax.numpy as jnp
from jax.experimental import pallas as pl
from jax.experimental.pallas import tpu as pltpu


# ---------------------------------------------------------------------------
# Generation-aware VMEM budget
# ---------------------------------------------------------------------------
def _vmem_limit_bytes():
    """Scoped-VMEM limit: ~half of physical VMEM (v7x: 64 MiB -> 32 MiB,
    v5e/v6e: 128 MiB -> 64 MiB), clamped to a safe range."""
    phys = 128 * 1024 * 1024
    try:
        info = pltpu.get_tpu_info()
        phys = int(getattr(info, "vmem_capacity_bytes", phys))
    except Exception:
        pass
    return max(16 << 20, min(phys // 2, 96 << 20))


def _round_up(v, m):
    return -(-v // m) * m


# ---------------------------------------------------------------------------
# Tile-size heuristic (lane/sublane-padding aware)
# ---------------------------------------------------------------------------
def _pick_node_tile(N, P, B, kt, d_in, d_out, nw, vmem_budget_bytes):
    """Largest node tile TN (divisor of N, multiple of the bf16 sublane tile 16
    unless == N) whose double-buffered blocks + working set fit the budget,
    preferring tiles that give >= 2 parallel grid steps (v7x dual-TC)."""

    def est_bytes(tn):
        tn_p = _round_up(tn, 16)
        in_blk = P * tn_p * _round_up(d_in, 128) * 2           # bf16 input block
        out_blk = P * tn_p * _round_up(d_out, 128) * 2         # bf16 output block
        w_blk = (_round_up(kt * d_in, 16) * _round_up(nw, 128) * 2
                 + 8 * _round_up(nw, 128) * 4)                 # folded weight + bias
        rows = P * tn_p
        work = rows * (_round_up(kt * d_in, 128) * 2           # bf16 LHS
                       + _round_up(nw, 128) * 4                # f32 accumulator
                       + _round_up(d_out, 128) * 4)            # f32 glu / result
        return 2 * (in_blk + out_blk + w_blk) + work           # x2 = double buffering

    cands = [tn for tn in range(N, 0, -1)
             if N % tn == 0 and (tn == N or tn % 16 == 0)]
    if not cands:
        return N
    multi = [tn for tn in cands if B * (N // tn) >= 2]
    order = multi + [tn for tn in cands if tn not in multi]
    for tn in order:
        if est_bytes(tn) <= vmem_budget_bytes:
            return tn
    return cands[-1]


# ---------------------------------------------------------------------------
# Fused kernel: wide-K temporal conv + bias + GLU + residual + scale
# ---------------------------------------------------------------------------
def _build_kernel(*, kt, d_in, d_out, P, TN, residual_mode):
    pad = (kt - 1) // 2
    rows = P * TN
    scale = math.sqrt(0.5)

    def kernel(x_ref, w_ref, b_ref, o_ref):
        # x_ref: (1, P, TN, d_in) bf16; w_ref: (kt*d_in, NW) bf16;
        # b_ref: (1, NW) f32;          o_ref: (1, P, TN, d_out) bf16.
        xb = x_ref[0]                                         # (P, TN, d_in) bf16

        # Zero-padded time window, built in registers (no scratch, no halo DMA).
        if pad > 0:
            z = jnp.zeros((pad, TN, d_in), xb.dtype)
            xt = jnp.concatenate([z, xb, z], axis=0)          # (P+kt-1, TN, d_in)
        else:
            xt = xb

        # Wide-K LHS: kt shifted windows concatenated along the channel (lane)
        # axis -> one MXU matmul with K = kt*d_in instead of kt small ones.
        lhs = jnp.concatenate([xt[j:j + P] for j in range(kt)], axis=-1)
        lhs = lhs.reshape(rows, kt * d_in)                    # bf16 (rows, kt*d_in)

        acc = jnp.dot(lhs, w_ref[...],
                      preferred_element_type=jnp.float32) + b_ref[...]

        # GLU over channels; divide goes to the EUP slot (approx reciprocal).
        lin = acc[:, :d_out]
        gate = acc[:, d_out:2 * d_out]
        glu = lin * pl.reciprocal(1.0 + jnp.exp(-gate), approx=True)

        # Residual branch (all branches end in ONE lane-dense store).
        if residual_mode == "proj":          # d_in > d_out: fused 1x1 conv columns
            res = acc[:, 2 * d_out:3 * d_out]
        else:
            x2f = xb.reshape(rows, d_in).astype(jnp.float32)
            if residual_mode == "identity":  # d_in == d_out
                res = x2f
            else:                            # d_in < d_out: zero-pad channels
                res = jnp.pad(x2f, ((0, 0), (0, d_out - d_in)))

        out = (glu + res) * scale
        o_ref[0] = out.reshape(P, TN, d_out).astype(o_ref.dtype)

    return kernel


# ---------------------------------------------------------------------------
# Wrapper (mirrors TemporalConvLayer.forward)
# ---------------------------------------------------------------------------
def temporal_conv_layer_forward(x, conv_w, conv_b,
                                input_conv_w=None, input_conv_b=None,
                                *, kt, d_out, node_tile=None):
    B, P, N, d_in = x.shape
    if kt % 2 == 0:
        # TODO(synk): even kt shrinks the time axis in the PyTorch module (the
        # residual add would then shape-mismatch); only odd kt is supported.
        raise NotImplementedError("only odd kt (time length preserved) is supported")
    assert conv_w.shape == (kt, d_in, 2 * d_out)
    has_input_conv = d_in > d_out
    if has_input_conv:
        assert input_conv_w is not None and input_conv_b is not None
        residual_mode = "proj"
    elif d_in == d_out:
        residual_mode = "identity"
    else:
        residual_mode = "zeropad"

    pad = (kt - 1) // 2
    nw = 3 * d_out if has_input_conv else 2 * d_out

    vmem_limit = _vmem_limit_bytes()
    TN = node_tile if node_tile is not None else _pick_node_tile(
        N, P, B, kt, d_in, d_out, nw, vmem_budget_bytes=vmem_limit // 2)
    assert N % TN == 0

    # bf16 activations at the HBM boundary (mem-bound kernel: half the bytes).
    x_bf = x.astype(jnp.bfloat16)

    # Fold the kt taps into one (kt*d_in, NW) weight; fuse the 1x1 residual
    # projection in as extra output columns acting on the center (unshifted) tap.
    w_fold = conv_w.astype(jnp.float32).reshape(kt * d_in, 2 * d_out)
    b_fold = conv_b.astype(jnp.float32).reshape(1, 2 * d_out)
    if has_input_conv:
        proj = jnp.zeros((kt * d_in, d_out), jnp.float32)
        proj = proj.at[pad * d_in:(pad + 1) * d_in, :].set(
            input_conv_w.astype(jnp.float32))
        w_fold = jnp.concatenate([w_fold, proj], axis=1)
        b_fold = jnp.concatenate(
            [b_fold, input_conv_b.astype(jnp.float32).reshape(1, d_out)], axis=1)
    w_fold = w_fold.astype(jnp.bfloat16)                      # bf16 MXU operand

    kernel = _build_kernel(kt=kt, d_in=d_in, d_out=d_out, P=P, TN=TN,
                           residual_mode=residual_mode)

    grid = (B, N // TN)
    in_specs = [
        pl.BlockSpec((1, P, TN, d_in), lambda b, nt: (b, 0, nt, 0)),
        pl.BlockSpec((kt * d_in, nw), lambda b, nt: (0, 0)),
        pl.BlockSpec((1, nw), lambda b, nt: (0, 0)),
    ]
    out_spec = pl.BlockSpec((1, P, TN, d_out), lambda b, nt: (b, 0, nt, 0))

    flops = 2 * B * P * N * (kt * d_in) * nw
    bytes_accessed = (B * P * N * d_in * 2 + B * P * N * d_out * 2
                      + int(w_fold.size) * 2 + int(b_fold.size) * 4)
    cost = pl.CostEstimate(flops=flops,
                           transcendentals=2 * B * P * N * d_out,
                           bytes_accessed=bytes_accessed)

    return pl.pallas_call(
        kernel,
        out_shape=jax.ShapeDtypeStruct((B, P, N, d_out), jnp.bfloat16),
        grid_spec=pltpu.PrefetchScalarGridSpec(
            num_scalar_prefetch=0,
            grid=grid,
            in_specs=in_specs,
            out_specs=out_spec,
        ),
        compiler_params=pltpu.CompilerParams(
            dimension_semantics=("parallel", "parallel"),
            vmem_limit_bytes=vmem_limit,
        ),
        cost_estimate=cost,
    )(x_bf, w_fold, b_fold)


# ---------------------------------------------------------------------------
# Pure-jnp reference (same bf16-operand / f32-accumulate math, f32 output)
# ---------------------------------------------------------------------------
def reference_forward(x, conv_w, conv_b, input_conv_w, input_conv_b, *, kt, d_out):
    B, P, N, d_in = x.shape
    pad = (kt - 1) // 2
    xb = x.astype(jnp.bfloat16)
    xp = jnp.pad(xb, ((0, 0), (pad, pad), (0, 0), (0, 0)))
    wb = conv_w.astype(jnp.bfloat16)
    acc = jnp.zeros((B, P, N, 2 * d_out), jnp.float32)
    for j in range(kt):
        acc = acc + jnp.einsum("bpnc,cd->bpnd", xp[:, j:j + P], wb[j],
                               preferred_element_type=jnp.float32)
    acc = acc + conv_b.astype(jnp.float32)
    glu = acc[..., :d_out] * jax.nn.sigmoid(acc[..., d_out:])
    if d_in == d_out:
        x_in = xb.astype(jnp.float32)
    elif d_in < d_out:
        x_in = jnp.pad(xb.astype(jnp.float32),
                       ((0, 0), (0, 0), (0, 0), (0, d_out - d_in)))
    else:
        x_in = (jnp.einsum("bpnc,cd->bpnd", xb,
                           input_conv_w.astype(jnp.bfloat16),
                           preferred_element_type=jnp.float32)
                + input_conv_b.astype(jnp.float32))
    return (glu + x_in) * math.sqrt(0.5)


if __name__ == "__main__":
    key = jax.random.PRNGKey(0)
    configs = [
        dict(B=2, P=8, N=16, d_in=64, d_out=128, kt=3),   # d_in < d_out (zero-pad residual)
        dict(B=2, P=8, N=16, d_in=32, d_out=32, kt=3),    # d_in == d_out (identity residual)
        dict(B=2, P=8, N=16, d_in=64, d_out=32, kt=5),    # d_in > d_out (fused 1x1 input_conv)
    ]

    for cfg in configs:
        B, P, N = cfg["B"], cfg["P"], cfg["N"]
        d_in, d_out, kt = cfg["d_in"], cfg["d_out"], cfg["kt"]
        key, k1, k2, k3, k4, k5 = jax.random.split(key, 6)

        # Activations live in bf16 at the kernel boundary (mem-bound kernel).
        x = jax.random.normal(k1, (B, P, N, d_in), jnp.float32).astype(jnp.bfloat16)
        conv_w = 0.1 * jax.random.normal(k2, (kt, d_in, 2 * d_out), jnp.float32)
        conv_b = 0.05 * jax.random.normal(k3, (2 * d_out,), jnp.float32)
        if d_in > d_out:
            w_in = 0.1 * jax.random.normal(k4, (d_in, d_out), jnp.float32)
            b_in = 0.05 * jax.random.normal(k5, (d_out,), jnp.float32)
        else:
            w_in = b_in = None

        out = temporal_conv_layer_forward(
            x, conv_w, conv_b, w_in, b_in, kt=kt, d_out=d_out)
        out = jax.block_until_ready(out)
        assert out.shape == (B, P, N, d_out), out.shape
        assert out.dtype == jnp.bfloat16, out.dtype

        ref = reference_forward(x, conv_w, conv_b, w_in, b_in, kt=kt, d_out=d_out)
        out_f = out.astype(jnp.float32)
        err = float(jnp.max(jnp.abs(out_f - ref)))
        assert bool(jnp.allclose(out_f, ref, atol=5e-2, rtol=5e-2)), (cfg, err)

    print("KERNEL_OK")
</pallas_src>

<mosaic_0001>
module attributes {stable_mosaic.version = 11 : i64} {
  func.func @kernel(%arg0: i32, %arg1: i32, %arg2: memref<1x8x16x64xbf16, #tpu.memory_space<vmem>>, %arg3: memref<192x256xbf16, #tpu.memory_space<vmem>>, %arg4: memref<1x256xf32, #tpu.memory_space<vmem>>, %arg5: memref<1x8x16x128xbf16, #tpu.memory_space<vmem>>) attributes {dimension_semantics = [#tpu.dimension_semantics<parallel>, #tpu.dimension_semantics<parallel>], iteration_bounds = array<i64: 2, 1>, scalar_prefetch = 0 : i64, scratch_operands = 0 : i64, tpu.core_type = #tpu.core_type<tc>, window_params = [{transform_indices = @transform_0, window_bounds = array<i64: 1, 8, 16, 64>}, {pipeline_mode = #tpu.pipeline_mode<synchronous>, transform_indices = @transform_1, window_bounds = array<i64: 192, 256>}, {pipeline_mode = #tpu.pipeline_mode<synchronous>, transform_indices = @transform_2, window_bounds = array<i64: 1, 256>}, {transform_indices = @transform_3, window_bounds = array<i64: 1, 8, 16, 128>}]} {
    %c0 = arith.constant 0 : index
    %c0_0 = arith.constant 0 : index
    %c0_1 = arith.constant 0 : index
    %c0_2 = arith.constant 0 : index
    %0 = vector.load %arg2[%c0, %c0_0, %c0_1, %c0_2] : memref<1x8x16x64xbf16, #tpu.memory_space<vmem>>, vector<1x8x16x64xbf16>
    %1 = vector.shape_cast %0 : vector<1x8x16x64xbf16> to vector<8x16x64xbf16>
    %cst = arith.constant 0.000000e+00 : bf16
    %2 = vector.broadcast %cst : bf16 to vector<1x16x64xbf16>
    %3 = tpu.concatenate %2, %1, %2 in 0 : vector<1x16x64xbf16>, vector<8x16x64xbf16>, vector<1x16x64xbf16> -> vector<10x16x64xbf16>
    %4 = vector.extract_strided_slice %3 {offsets = [0, 0, 0], sizes = [8, 16, 64], strides = [1, 1, 1]} : vector<10x16x64xbf16> to vector<8x16x64xbf16>
    %5 = vector.extract_strided_slice %3 {offsets = [1, 0, 0], sizes = [8, 16, 64], strides = [1, 1, 1]} : vector<10x16x64xbf16> to vector<8x16x64xbf16>
    %6 = vector.extract_strided_slice %3 {offsets = [2, 0, 0], sizes = [8, 16, 64], strides = [1, 1, 1]} : vector<10x16x64xbf16> to vector<8x16x64xbf16>
    %7 = tpu.concatenate %4, %5, %6 in 2 : vector<8x16x64xbf16>, vector<8x16x64xbf16>, vector<8x16x64xbf16> -> vector<8x16x192xbf16>
    %8 = vector.shape_cast %7 : vector<8x16x192xbf16> to vector<128x192xbf16>
    %c0_3 = arith.constant 0 : index
    %c0_4 = arith.constant 0 : index
    %9 = vector.load %arg3[%c0_3, %c0_4] : memref<192x256xbf16, #tpu.memory_space<vmem>>, vector<192x256xbf16>
    %cst_5 = arith.constant dense<0.000000e+00> : vector<128x256xf32>
    %10 = tpu.matmul %8, %9, %cst_5 {dimension_numbers = #tpu.dot_dimension_numbers<[1], [0], [0], [1], [0, 0, 1, 1], [], []>} : vector<128x192xbf16>, vector<192x256xbf16>, vector<128x256xf32> -> vector<128x256xf32>
    %c0_6 = arith.constant 0 : index
    %c0_7 = arith.constant 0 : index
    %11 = vector.load %arg4[%c0_6, %c0_7] : memref<1x256xf32, #tpu.memory_space<vmem>>, vector<1x256xf32>
    %12 = vector.broadcast %11 : vector<1x256xf32> to vector<128x256xf32>
    %13 = arith.addf %10, %12 : vector<128x256xf32>
    %14 = vector.extract_strided_slice %13 {offsets = [0, 0], sizes = [128, 128], strides = [1, 1]} : vector<128x256xf32> to vector<128x128xf32>
    %15 = vector.extract_strided_slice %13 {offsets = [0, 128], sizes = [128, 128], strides = [1, 1]} : vector<128x256xf32> to vector<128x128xf32>
    %cst_8 = arith.constant 0.000000e+00 : f32
    %16 = vector.broadcast %cst_8 : f32 to vector<128x128xf32>
    %17 = arith.subf %16, %15 : vector<128x128xf32>
    %18 = math.exp %17 : vector<128x128xf32>
    %cst_9 = arith.constant 1.000000e+00 : f32
    %19 = vector.broadcast %cst_9 : f32 to vector<128x128xf32>
    %20 = arith.addf %19, %18 : vector<128x128xf32>
    %21 = tpu.reciprocal %20 {approx = true} : vector<128x128xf32> -> vector<128x128xf32>
    %22 = arith.mulf %14, %21 : vector<128x128xf32>
    %23 = vector.shape_cast %1 : vector<8x16x64xbf16> to vector<128x64xbf16>
    %24 = arith.extf %23 : vector<128x64xbf16> to vector<128x64xf32>
    %c0_i32 = arith.constant 0 : i32
    %25 = arith.sitofp %c0_i32 : i32 to f32
    %26 = vector.broadcast %25 : f32 to vector<128x64xf32>
    %27 = tpu.concatenate %24, %26 in 1 : vector<128x64xf32>, vector<128x64xf32> -> vector<128x128xf32>
    %28 = arith.addf %22, %27 : vector<128x128xf32>
    %cst_10 = arith.constant 0.707106769 : f32
    %29 = vector.broadcast %cst_10 : f32 to vector<128x128xf32>
    %30 = arith.mulf %28, %29 : vector<128x128xf32>
    %31 = vector.shape_cast %30 : vector<128x128xf32> to vector<8x16x128xf32>
    %32 = arith.truncf %31 : vector<8x16x128xf32> to vector<8x16x128xbf16>
    %c0_11 = arith.constant 0 : index
    %c0_12 = arith.constant 0 : index
    %c0_13 = arith.constant 0 : index
    %c0_14 = arith.constant 0 : index
    %33 = vector.load %arg5[%c0_11, %c0_12, %c0_13, %c0_14] : memref<1x8x16x128xbf16, #tpu.memory_space<vmem>>, vector<1x8x16x128xbf16>
    %34 = vector.shape_cast %33 : vector<1x8x16x128xbf16> to vector<8x16x128xbf16>
    %35 = vector.shape_cast %32 : vector<8x16x128xbf16> to vector<1x8x16x128xbf16>
    tpu.vector_store %arg5[%c0_11, %c0_12, %c0_13, %c0_14], %35 {strides = array<i32>} : memref<1x8x16x128xbf16, #tpu.memory_space<vmem>>, vector<1x8x16x128xbf16>,
    return
  }
  func.func @transform_0(%arg0: i32, %arg1: i32) -> (i32, i32, i32, i32) {
    %c0_i32 = arith.constant 0 : i32
    %c0_i32_0 = arith.constant 0 : i32
    %c0_i32_1 = arith.constant 0 : i32
    return %arg0, %c0_i32, %arg1, %c0_i32_0 : i32, i32, i32, i32
  }
  func.func @transform_1(%arg0: i32, %arg1: i32) -> (i32, i32) {
    %c0_i32 = arith.constant 0 : i32
    %c0_i32_0 = arith.constant 0 : i32
    %c0_i32_1 = arith.constant 0 : i32
    return %c0_i32, %c0_i32_0 : i32, i32
  }
  func.func @transform_2(%arg0: i32, %arg1: i32) -> (i32, i32) {
    %c0_i32 = arith.constant 0 : i32
    %c0_i32_0 = arith.constant 0 : i32
    %c0_i32_1 = arith.constant 0 : i32
    return %c0_i32, %c0_i32_0 : i32, i32
  }
  func.func @transform_3(%arg0: i32, %arg1: i32) -> (i32, i32, i32, i32) {
    %c0_i32 = arith.constant 0 : i32
    %c0_i32_0 = arith.constant 0 : i32
    %c0_i32_1 = arith.constant 0 : i32
    return %arg0, %c0_i32, %arg1, %c0_i32_0 : i32, i32, i32, i32
  }
}

</mosaic_0001>

<llo_original>
// kernel: tpu_custom_call.1
$region0: #{tpu_custom_call.1}
  #allocation0 [shape = 'u32[]', space=smem, size = 0x4, offset = 0x4, fixed_abs, tag = 'smem constant byte address 0x4 - core index']
  #allocation1 [shape = 'u32[144,128]{1,0:T(1,128)}', space=vmem, size = 0x12000, scoped, tag = 'internal scratch']
  %s0 = inlined_call_operand.hbm [shape: bf16[2,8,16,64], index: 0, kind: input, shape index: {}]
  %s1 = inlined_call_operand.hbm [shape: bf16[192,256], index: 1, kind: input, shape index: {}]
  %s2 = inlined_call_operand.vmem [shape: f32[1,256], index: 2, kind: input, shape index: {}]
  %s3 = inlined_call_operand.hbm [shape: bf16[2,8,16,128], index: 3, kind: output, shape index: {}]
  %s4 = sld [smem:[#allocation0]]
  $region53: #{tpu_custom_call.1} parent=0
    _
  %s6 = ssub.s32 1, %s4
  %s7 = scalar_select 0, %s6, %s4
  $region1: #{tpu_custom_call.1} parent=0
    #allocation2 [shape = 'u8[65536]{0}', space=vmem, size = 0x10000, scoped, tag = 'input window, operand 0']
    #allocation3 [shape = 's32[2]{0}', space=sflag, size = 0x8, scoped, tag = 'scoped memory for tpu_custom_call.1']
    #allocation4 [shape = 's32[2]{0}', space=sflag, size = 0x8, scoped, tag = 'scoped memory for tpu_custom_call.1']
    #allocation5 [shape = 'u8[98304]{0}', space=vmem, size = 0x18000, scoped, tag = 'input window, operand 1, single buffered']
    #allocation6 [shape = 's32[1]{0}', space=sflag, size = 0x4, scoped, tag = 'scoped memory for tpu_custom_call.1']
    #allocation7 [shape = 'u8[65536]{0}', space=vmem, size = 0x10000, scoped, tag = 'output window, operand 0']
    %8 = vsyncpa [#allocation3], 0
    %s9 = scalar_lea.sflag [#allocation3], 1
    %10 = vsyncpa %s9, 0
    %11 = vsyncpa [#allocation6], 0
    %12 = vsyncpa [#allocation4], 0
    %s13 = scalar_lea.sflag [#allocation4], 1
    %14 = vsyncpa %s13, 0
    loop: start=0, step=1, limit=4
    $region2: #{tpu_custom_call.1} parent=1 // loop_pre_header
      _
    $region3: #{tpu_custom_call.1} parent=1 // loop_header
      %s16 = sphi 0, %s20
      %p17 = scmp.ge.s32.totalorder %s16, 4
      %s23 = sphi 0, %s35
      %s24 = sphi 0, %s31
      %s25 = sphi 0, %s23
      %s26 = sphi 0, %s24
      %s27 = sphi 0, %s25
      %s28 = sphi 0, %s26
      %s40 = sphi 0, %s42
      %s43 = sphi 0, %s40
      %s44 = sphi 0, %s43
      %s60 = sphi 0, %s44
      %s64 = sphi 0, %s64
      %s66 = sphi 0, %s64
      %s67 = sphi 0, %s66
      %s81 = sphi 0, %s67
      %s85 = sphi 0, %s85
      %s87 = sphi 0, %s85
      %s88 = sphi 0, %s87
      %s102 = sphi 0, %s88
      %s110 = sphi 0, %s112
      %s113 = sphi 0, %s110
      %s114 = sphi 0, %s113
      %s130 = sphi 0, %s114
    $region4: #{tpu_custom_call.1} parent=1 // loop_header_branch
      %19 = sbr.rel (%p17) target = $region8
    $region5: #{tpu_custom_call.1} parent=1 // loop_body
      %s21 = ssub.s32 %s16, 1
      %s22 = ssub.s32 %s16, 2
      %s29 = sadd.s32 1, %s24
      %p30 = scmp.ge.s32.totalorder %s29, 1
      %s31 = scalar_select %p30, 0, %s29
      %s32 = sadd.s32 1, %s23
      %s33 = scalar_select %p30, %s32, %s23
      %p34 = scmp.ge.s32.totalorder %s33, 2
      %s35 = scalar_select %p34, 0, %s33
      %s36 = ssub.s32 %s23, %s35
      %s37 = ssub.s32 %s24, %s31
      %s38 = sor.u32 %s36, %s37
      %p39 = scmp.eq.s32.totalorder %s38, 0
      %s41 = sadd.s32 %s40, 1
      %s42 = scalar_select %p39, %s40, %s41
      %p45 = pneg %p39
      %p46 = scmp.eq.s32.totalorder %s16, 1
      %p47 = por %p45, %p46
      %p48 = scmp.ne.s32.totalorder %s40, %s43
      %p49 = scmp.eq.s32.totalorder %s16, 0
      %p50 = por %p48, %p49
      %p51 = scmp.ne.s32.totalorder %s40, %s43
      %p52 = scmp.eq.s32.totalorder %s21, 1
      %p53 = por %p51, %p52
      %p54 = scmp.ne.s32.totalorder %s43, %s44
      %p55 = scmp.eq.s32.totalorder %s21, 0
      %p56 = por %p54, %p55
      %p57 = scmp.ne.s32.totalorder %s43, %s44
      %p58 = scmp.eq.s32.totalorder %s22, 1
      %p59 = por %p57, %p58
      %p61 = scmp.ne.s32.totalorder %s44, %s60
      %p62 = scmp.eq.s32.totalorder %s22, 0
      %p63 = por %p61, %p62
      %s65 = sadd.s32 %s64, 1
      %p68 = scmp.eq.s32.totalorder %s16, 1
      %p69 = scmp.ne.s32.totalorder %s64, %s66
      %p70 = scmp.eq.s32.totalorder %s16, 0
      %p71 = por %p69, %p70
      %p72 = scmp.ne.s32.totalorder %s64, %s66
      %p73 = scmp.eq.s32.totalorder %s21, 1
      %p74 = por %p72, %p73
      %p75 = scmp.ne.s32.totalorder %s66, %s67
      %p76 = scmp.eq.s32.totalorder %s21, 0
      %p77 = por %p75, %p76
      %p78 = scmp.ne.s32.totalorder %s66, %s67
      %p79 = scmp.eq.s32.totalorder %s22, 1
      %p80 = por %p78, %p79
      %p82 = scmp.ne.s32.totalorder %s67, %s81
      %p83 = scmp.eq.s32.totalorder %s22, 0
      %p84 = por %p82, %p83
      %s86 = sadd.s32 %s85, 1
      %p89 = scmp.eq.s32.totalorder %s16, 1
      %p90 = scmp.ne.s32.totalorder %s85, %s87
      %p91 = scmp.eq.s32.totalorder %s16, 0
      %p92 = por %p90, %p91
      %p93 = scmp.ne.s32.totalorder %s85, %s87
      %p94 = scmp.eq.s32.totalorder %s21, 1
      %p95 = por %p93, %p94
      %p96 = scmp.ne.s32.totalorder %s87, %s88
      %p97 = scmp.eq.s32.totalorder %s21, 0
      %p98 = por %p96, %p97
      %p99 = scmp.ne.s32.totalorder %s87, %s88
      %p100 = scmp.eq.s32.totalorder %s22, 1
      %p101 = por %p99, %p100
      %p103 = scmp.ne.s32.totalorder %s88, %s102
      %p104 = scmp.eq.s32.totalorder %s22, 0
      %p105 = por %p103, %p104
      %s106 = ssub.s32 %s23, %s35
      %s107 = ssub.s32 %s24, %s31
      %s108 = sor.u32 %s106, %s107
      %p109 = scmp.eq.s32.totalorder %s108, 0
      %s111 = sadd.s32 %s110, 1
      %s112 = scalar_select %p109, %s110, %s111
      %p115 = pneg %p109
      %p116 = scmp.eq.s32.totalorder %s16, 1
      %p117 = por %p115, %p116
      %p118 = scmp.ne.s32.totalorder %s110, %s113
      %p119 = scmp.eq.s32.totalorder %s16, 0
      %p120 = por %p118, %p119
      %p121 = scmp.ne.s32.totalorder %s110, %s113
      %p122 = scmp.eq.s32.totalorder %s21, 1
      %p123 = por %p121, %p122
      %p124 = scmp.ne.s32.totalorder %s113, %s114
      %p125 = scmp.eq.s32.totalorder %s21, 0
      %p126 = por %p124, %p125
      %p127 = scmp.ne.s32.totalorder %s113, %s114
      %p128 = scmp.eq.s32.totalorder %s22, 1
      %p129 = por %p127, %p128
      %p131 = scmp.ne.s32.totalorder %s114, %s130
      %p132 = scmp.eq.s32.totalorder %s22, 0
      %p133 = por %p131, %p132
      %p134 = scmp.le.s32.totalorder 1, %s16
      %p135 = scmp.lt.s32.totalorder %s16, 3
      %p136 = pnand %p134, %p135
      %p137 = pneg %p136
      // Predicated region
      $region9: #{tpu_custom_call.1} parent=5 // pred_check
        _
      $region10: #{tpu_custom_call.1} parent=5 // pred_check_branch
        %139 = sbr.rel (%p136) target = $region12
      $region11: #{tpu_custom_call.1} parent=5 // pred_region
        %s140 = ssub.s32 %s16, 1
        // Predicated region
        $region13: #{tpu_custom_call.1} parent=11 // pred_check
          %p141 = pneg %p77
        $region14: #{tpu_custom_call.1} parent=11 // pred_check_branch
          %143 = sbr.rel (%p141) target = $region16
        $region15: #{tpu_custom_call.1} parent=11 // pred_region
          %s145 = ssub.s32 3072, 3072
          %146 = vsyncadd [#allocation6], %s145
          %s147 = sshll.u32 [#allocation5], 4
          %s148 = int_to_ptr.vmem [resolvable:$true] %s147
          %153 = dma.hbm_to_vmem [thread:$0]  %s1, 3072, %s148, [#allocation6], 128, 128, 8
        $region16: #{tpu_custom_call.1} parent=11 // pred_fallthru
          _
        // Predicated region
        $region17: #{tpu_custom_call.1} parent=11 // pred_check
          %p154 = pneg %p98
        $region18: #{tpu_custom_call.1} parent=11 // pred_check_branch
          %156 = sbr.rel (%p154) target = $region20
        $region19: #{tpu_custom_call.1} parent=11 // pred_region
          _
        $region20: #{tpu_custom_call.1} parent=11 // pred_fallthru
          _
      $region12: #{tpu_custom_call.1} parent=5 // pred_fallthru
        _
      %p157 = scmp.lt.s32.totalorder %s16, 2
      // Predicated region
      $region21: #{tpu_custom_call.1} parent=5 // pred_check
        %p158 = pneg %p157
      $region22: #{tpu_custom_call.1} parent=5 // pred_check_branch
        %160 = sbr.rel (%p158) target = $region24
      $region23: #{tpu_custom_call.1} parent=5 // pred_region
        // Predicated region
        $region25: #{tpu_custom_call.1} parent=23 // pred_check
          %p161 = pneg %p50
        $region26: #{tpu_custom_call.1} parent=23 // pred_check_branch
          %163 = sbr.rel (%p161) target = $region28
        $region27: #{tpu_custom_call.1} parent=23 // pred_region
          %s164 = sand.u32 %s40, 1
          %s165 = scalar_lea.sflag [#allocation3], %s164
          %s166 = sand.u32 %s40, 1
          %s167 = smul.addr %s166, 64
          %s168 = scalar_lea.vmem [#allocation2], %s167
          %s169 = smul.u32 2, %s24
          %s171 = ssub.s32 1024, 1024
          %172 = vsyncadd %s165, %s171
          %s173 = smul.addr %s23, 16
          %s174 = sadd.s32 %s169, %s173
          %s175 = smul.addr %s174, 64
          %s176 = scalar_lea.hbm %s0, %s175
          %s177 = sshll.u32 %s168, 4
          %s178 = int_to_ptr.vmem [resolvable:$true] %s177
          %183 = dma.hbm_to_vmem [thread:$0]  %s176, 1024, %s178, %s165, 64, 64, 4
        $region28: #{tpu_custom_call.1} parent=23 // pred_fallthru
          _
      $region24: #{tpu_custom_call.1} parent=5 // pred_fallthru
        _
      %p184 = scmp.le.s32.totalorder 1, %s16
      %p185 = scmp.lt.s32.totalorder %s16, 3
      %p186 = pnand %p184, %p185
      %p187 = pneg %p186
      // Predicated region
      $region29: #{tpu_custom_call.1} parent=5 // pred_check
        _
      $region30: #{tpu_custom_call.1} parent=5 // pred_check_branch
        %189 = sbr.rel (%p186) target = $region32
      $region31: #{tpu_custom_call.1} parent=5 // pred_region
        %s190 = ssub.s32 %s16, 1
        %s191 = sand.u32 %s43, 1
        %s192 = scalar_lea.sflag [#allocation3], %s191
        %s193 = sand.u32 %s43, 1
        %s194 = smul.addr %s193, 64
        %s195 = scalar_lea.vmem [#allocation2], %s194
        // Predicated region
        $region33: #{tpu_custom_call.1} parent=31 // pred_check
          %p196 = pneg %p56
        $region34: #{tpu_custom_call.1} parent=31 // pred_check_branch
          %198 = sbr.rel (%p196) target = $region36
        $region35: #{tpu_custom_call.1} parent=31 // pred_region
          %199 = dma.done %s192, 1024
        $region36: #{tpu_custom_call.1} parent=31 // pred_fallthru
          _
        // Predicated region
        $region37: #{tpu_custom_call.1} parent=31 // pred_check
          %p200 = pneg %p77
        $region38: #{tpu_custom_call.1} parent=31 // pred_check_branch
          %202 = sbr.rel (%p200) target = $region40
        $region39: #{tpu_custom_call.1} parent=31 // pred_region
          %203 = dma.done [#allocation6], 3072
        $region40: #{tpu_custom_call.1} parent=31 // pred_fallthru
          _
        %s204 = sand.u32 %s43, 1
        %s205 = scalar_lea.sflag [#allocation3], %s204
        %s206 = sand.u32 %s43, 1
        %s207 = smul.addr %s206, 64
        %s208 = scalar_lea.vmem [#allocation2], %s207
        %p209 = pneg %p56
        %p210 = pneg %p53
        %p211 = pneg %p77
        %p212 = pneg %p74
        %p213 = pneg %p98
        %p214 = pneg %p95
        %p215 = pneg %p126
        %p216 = pneg %p123
        %s217 = sand.u32 %s113, 1
        %s218 = scalar_lea.sflag [#allocation4], %s217
        %s219 = sand.u32 %s113, 1
        %s220 = smul.addr %s219, 64
        %s221 = scalar_lea.vmem [#allocation7], %s220
        %s222 = smul.u32 2, %s26
        %s223 = smul.u32 2, %s26
        %v225 = vld [vmem:[%s195] sm:$0xf]
        %v226 = vld [vmem:[%s195 + $0x4] sm:$0xf]
        %v227 = vld [vmem:[%s195 + $0x8] sm:$0xf]
        %v228 = vld [vmem:[%s195 + $0xc] sm:$0xf]
        %v229 = vld [vmem:[%s195 + $0x10] sm:$0xf]
        %v230 = vld [vmem:[%s195 + $0x14] sm:$0xf]
        %v231 = vld [vmem:[%s195 + $0x18] sm:$0xf]
        %v232 = vld [vmem:[%s195 + $0x1c] sm:$0xf]
        %v233 = vld [vmem:[%s195 + $0x20] sm:$0xf]
        %v234 = vld [vmem:[%s195 + $0x24] sm:$0xf]
        %v235 = vld [vmem:[%s195 + $0x28] sm:$0xf]
        %v236 = vld [vmem:[%s195 + $0x2c] sm:$0xf]
        %v237 = vld [vmem:[%s195 + $0x30] sm:$0xf]
        %v238 = vld [vmem:[%s195 + $0x34] sm:$0xf]
        %v239 = vld [vmem:[%s195 + $0x38] sm:$0xf]
        %v240 = vld [vmem:[%s195 + $0x3c] sm:$0xf]
        %v257 = vunpack.c.l.b16 %v225
        %v258 = vunpack.c.l.b16 %v226
        %v259 = vunpack.c.l.b16 %v227
        %v260 = vunpack.c.l.b16 %v228
        %v261 = vunpack.c.l.b16 %v229
        %v262 = vunpack.c.l.b16 %v230
        %v263 = vunpack.c.l.b16 %v231
        %v264 = vunpack.c.l.b16 %v232
        %v265 = vunpack.c.l.b16 %v233
        %v266 = vunpack.c.l.b16 %v234
        %v267 = vunpack.c.l.b16 %v235
        %v268 = vunpack.c.l.b16 %v236
        %v269 = vunpack.c.l.b16 %v237
        %v270 = vunpack.c.l.b16 %v238
        %v271 = vunpack.c.l.b16 %v239
        %v272 = vunpack.c.l.b16 %v240
        %v273 = vpack.c.b16 %v258, %v257
        %v274 = vpack.c.b16 %v260, %v259
        %v275 = vpack.c.b16 %v262, %v261
        %v276 = vpack.c.b16 %v264, %v263
        %v277 = vpack.c.b16 %v266, %v265
        %v278 = vpack.c.b16 %v268, %v267
        %v279 = vpack.c.b16 %v270, %v269
        %v280 = vpack.c.b16 %v272, %v271
        %281 = vrot.lane.b32.xlu0 %v273, 64
        %v282 = vpop.permute.xlu0 %281
        %283 = vrot.lane.b32.xlu0 %v274, 64
        %v284 = vpop.permute.xlu0 %283
        %285 = vrot.lane.b32.xlu0 %v275, 64
        %v286 = vpop.permute.xlu0 %285
        %287 = vrot.lane.b32.xlu0 %v276, 64
        %v288 = vpop.permute.xlu0 %287
        %289 = vrot.lane.b32.xlu0 %v277, 64
        %v290 = vpop.permute.xlu0 %289
        %291 = vrot.lane.b32.xlu0 %v278, 64
        %v292 = vpop.permute.xlu0 %291
        %293 = vrot.lane.b32.xlu0 %v279, 64
        %v294 = vpop.permute.xlu0 %293
        %295 = vrot.lane.b32.xlu0 %v280, 64
        %v296 = vpop.permute.xlu0 %295
        %vm297 = vcmask 523264
        %v300 = vsel %vm297, 0, %v282
        %v304 = vsel %vm297, %v273, %v284
        %v308 = vsel %vm297, %v274, %v286
        %v312 = vsel %vm297, %v275, %v288
        %v316 = vsel %vm297, %v276, %v290
        %v320 = vsel %vm297, %v277, %v292
        %v324 = vsel %vm297, %v278, %v294
        %v328 = vsel %vm297, %v279, %v296
        %v330 = vld [vmem:[#allocation5] sm:$0xff]
        %v331 = vld [vmem:[#allocation5 + $0x8] sm:$0xff]
        %v332 = vld [vmem:[#allocation5 + $0x10] sm:$0xff]
        %v333 = vld [vmem:[#allocation5 + $0x18] sm:$0xff]
        %v334 = vld [vmem:[#allocation5 + $0x20] sm:$0xff]
        %v335 = vld [vmem:[#allocation5 + $0x28] sm:$0xff]
        %v336 = vld [vmem:[#allocation5 + $0x30] sm:$0xff]
        %v337 = vld [vmem:[#allocation5 + $0x38] sm:$0xff]
        %v338 = vld [vmem:[#allocation5 + $0x40] sm:$0xff]
        %v339 = vld [vmem:[#allocation5 + $0x48] sm:$0xff]
        %v340 = vld [vmem:[#allocation5 + $0x50] sm:$0xff]
        %v341 = vld [vmem:[#allocation5 + $0x58] sm:$0xff]
        %v342 = vld [vmem:[#allocation5 + $0x60] sm:$0xff]
        %v343 = vld [vmem:[#allocation5 + $0x68] sm:$0xff]
        %v344 = vld [vmem:[#allocation5 + $0x70] sm:$0xff]
        %v345 = vld [vmem:[#allocation5 + $0x78] sm:$0xff]
        %v346 = vld [vmem:[#allocation5 + $0x80] sm:$0xff]
        %v347 = vld [vmem:[#allocation5 + $0x88] sm:$0xff]
        %v348 = vld [vmem:[#allocation5 + $0x90] sm:$0xff]
        %v349 = vld [vmem:[#allocation5 + $0x98] sm:$0xff]
        %v350 = vld [vmem:[#allocation5 + $0xa0] sm:$0xff]
        %v351 = vld [vmem:[#allocation5 + $0xa8] sm:$0xff]
        %v352 = vld [vmem:[#allocation5 + $0xb0] sm:$0xff]
        %v353 = vld [vmem:[#allocation5 + $0xb8] sm:$0xff]
        %v354 = vld [vmem:[%s2] sm:$0x3]
        %v356 = vlaneseq
        %v357 = vshrl.u32 %v356, 7
        %v358 = vsub.s32 0, %v357
        %v359 = vrot.slane %v354, %v358
        %v360 = vlaneseq
        %v361 = vshrl.u32 %v360, 7
        %v362 = vsub.s32 1, %v361
        %v363 = vrot.slane %v354, %v362
        %v390 = vunpack.c.l.b16 %v330
        %v391 = vunpack.c.h.b16 %v330
        %v392 = vunpack.c.l.b16 %v331
        %v393 = vunpack.c.h.b16 %v331
        %v394 = vunpack.c.l.b16 %v332
        %v395 = vunpack.c.h.b16 %v332
        %v396 = vunpack.c.l.b16 %v333
        %v397 = vunpack.c.h.b16 %v333
        %v398 = vunpack.c.l.b16 %v334
        %v399 = vunpack.c.h.b16 %v334
        %v400 = vunpack.c.l.b16 %v335
        %v401 = vunpack.c.h.b16 %v335
        %v402 = vunpack.c.l.b16 %v336
        %v403 = vunpack.c.h.b16 %v336
        %v404 = vunpack.c.l.b16 %v337
        %v405 = vunpack.c.h.b16 %v337
        %v406 = vunpack.c.l.b16 %v338
        %v407 = vunpack.c.h.b16 %v338
        %v408 = vunpack.c.l.b16 %v339
        %v409 = vunpack.c.h.b16 %v339
        %v410 = vunpack.c.l.b16 %v340
        %v411 = vunpack.c.h.b16 %v340
        %v412 = vunpack.c.l.b16 %v341
        %v413 = vunpack.c.h.b16 %v341
        %v414 = vunpack.c.l.b16 %v342
        %v415 = vunpack.c.h.b16 %v342
        %v416 = vunpack.c.l.b16 %v343
        %v417 = vunpack.c.h.b16 %v343
        %v418 = vunpack.c.l.b16 %v344
        %v419 = vunpack.c.h.b16 %v344
        %v420 = vunpack.c.l.b16 %v345
        %v421 = vunpack.c.h.b16 %v345
        %v422 = vunpack.c.l.b16 %v346
        %v423 = vunpack.c.h.b16 %v346
        %v424 = vunpack.c.l.b16 %v347
        %v425 = vunpack.c.h.b16 %v347
        %v426 = vunpack.c.l.b16 %v348
        %v427 = vunpack.c.h.b16 %v348
        %v428 = vunpack.c.l.b16 %v349
        %v429 = vunpack.c.h.b16 %v349
        %v430 = vunpack.c.l.b16 %v350
        %v431 = vunpack.c.h.b16 %v350
        %v432 = vunpack.c.l.b16 %v351
        %v433 = vunpack.c.h.b16 %v351
        %v434 = vunpack.c.l.b16 %v352
        %v435 = vunpack.c.h.b16 %v352
        %v436 = vunpack.c.l.b16 %v353
        %v437 = vunpack.c.h.b16 %v353
        %v438 = vpack.c.b16 %v392, %v390
        %v439 = vpack.c.b16 %v393, %v391
        %v440 = vpack.c.b16 %v396, %v394
        %v441 = vpack.c.b16 %v397, %v395
        %v442 = vpack.c.b16 %v400, %v398
        %v443 = vpack.c.b16 %v401, %v399
        %v444 = vpack.c.b16 %v404, %v402
        %v445 = vpack.c.b16 %v405, %v403
        %v446 = vpack.c.b16 %v408, %v406
        %v447 = vpack.c.b16 %v409, %v407
        %v448 = vpack.c.b16 %v412, %v410
        %v449 = vpack.c.b16 %v413, %v411
        %v450 = vpack.c.b16 %v416, %v414
        %v451 = vpack.c.b16 %v417, %v415
        %v452 = vpack.c.b16 %v420, %v418
        %v453 = vpack.c.b16 %v421, %v419
        %v454 = vpack.c.b16 %v424, %v422
        %v455 = vpack.c.b16 %v425, %v423
        %v456 = vpack.c.b16 %v428, %v426
        %v457 = vpack.c.b16 %v429, %v427
        %v458 = vpack.c.b16 %v432, %v430
        %v459 = vpack.c.b16 %v433, %v431
        %v460 = vpack.c.b16 %v436, %v434
        %v461 = vpack.c.b16 %v437, %v435
        %v486 = vsel %vm297, %v274, 0
        %v488 = vsel %vm297, %v275, 0
        %v490 = vsel %vm297, %v276, 0
        %v492 = vsel %vm297, %v277, 0
        %v494 = vsel %vm297, %v278, 0
        %v496 = vsel %vm297, %v279, 0
        %v499 = vsel %vm297, %v280, 0
        %v501 = vsel %vm297, 0, 0
        %503 = vmatprep.subr.bf16.mxu0 %v453
        %504 = vmatpush1.bf16.msra.mxu0 %v452
        %505 = vmatprep.subr.bf16.mxu0 %v451
        %506 = vmatpush1.bf16.msra.mxu0 %v450
        %507 = vmatprep.subr.bf16.mxu0 %v449
        %508 = vmatpush1.bf16.msra.mxu0 %v448
        %509 = vmatprep.subr.bf16.mxu0 %v447
        %510 = vmatpush1.bf16.msra.mxu0 %v446
        %511 = vmatprep.subr.bf16.mxu0 %v445
        %512 = vmatpush1.bf16.msra.mxu0 %v444
        %513 = vmatprep.subr.bf16.mxu0 %v443
        %514 = vmatpush1.bf16.msra.mxu0 %v442
        %515 = vmatprep.subr.bf16.mxu0 %v441
        %516 = vmatpush1.bf16.msra.mxu0 %v440
        %517 = vmatprep.subr.bf16.mxu0 %v439
        %518 = vmatpush1.bf16.msra.mxu0 %v438
        %519 = vmatprep.subr.bf16.mxu0 0
        %520 = vmatpush2.bf16.msra.mxu0 0
        %521 = vmatprep.subr.bf16.mxu0 0
        %522 = vmatpush2.bf16.msra.mxu0 0
        %523 = vmatprep.subr.bf16.mxu0 0
        %524 = vmatpush2.bf16.msra.mxu0 0
        %525 = vmatprep.subr.bf16.mxu0 0
        %526 = vmatpush2.bf16.msra.mxu0 0
        %527 = vmatprep.subr.bf16.mxu0 %v461
        %528 = vmatpush2.bf16.msra.mxu0 %v460
        %529 = vmatprep.subr.bf16.mxu0 %v459
        %530 = vmatpush2.bf16.msra.mxu0 %v458
        %531 = vmatprep.subr.bf16.mxu0 %v457
        %532 = vmatpush2.bf16.msra.mxu0 %v456
        %533 = vmatprep.subr.bf16.mxu0 %v455
        %534 = vmatpush2.bf16.msra.mxu0 %v454
        %535 = vmatprep.mubr.bf16.mxu0 %v486
        %536 = vmatmul.mubr.bf16.gmra.mxu0 %v300
        %v537 = vpop.f32.mrf.mxu0
        %v538 = vadd.f32 %v359, %v537
        %v539 = vpop.f32.mrf.mxu0
        %v540 = vadd.f32 %v363, %v539
        %v541 = vpop.f32.mrf.mxu0
        %v542 = vadd.f32 %v359, %v541
        %v543 = vpop.f32.mrf.mxu0
        %v544 = vadd.f32 %v363, %v543
        %545 = vmatprep.mubr.bf16.mxu0 %v488
        %546 = vmatmul.mubr.bf16.gmra.mxu0 %v304
        %v547 = vpop.f32.mrf.mxu0
        %v548 = vadd.f32 %v359, %v547
        %v549 = vpop.f32.mrf.mxu0
        %v550 = vadd.f32 %v363, %v549
        %v551 = vpop.f32.mrf.mxu0
        %v552 = vadd.f32 %v359, %v551
        %v553 = vpop.f32.mrf.mxu0
        %v554 = vadd.f32 %v363, %v553
        %555 = vmatprep.mubr.bf16.mxu0 %v490
        %556 = vmatmul.mubr.bf16.gmra.mxu0 %v308
        %v557 = vpop.f32.mrf.mxu0
        %v558 = vadd.f32 %v359, %v557
        %v559 = vpop.f32.mrf.mxu0
        %v560 = vadd.f32 %v363, %v559
        %v561 = vpop.f32.mrf.mxu0
        %v562 = vadd.f32 %v359, %v561
        %v563 = vpop.f32.mrf.mxu0
        %v564 = vadd.f32 %v363, %v563
        %565 = vmatprep.mubr.bf16.mxu0 %v492
        %566 = vmatmul.mubr.bf16.gmra.mxu0 %v312
        %v567 = vpop.f32.mrf.mxu0
        %v568 = vadd.f32 %v359, %v567
        %v569 = vpop.f32.mrf.mxu0
        %v570 = vadd.f32 %v363, %v569
        %v571 = vpop.f32.mrf.mxu0
        %v572 = vadd.f32 %v359, %v571
        %v573 = vpop.f32.mrf.mxu0
        %v574 = vadd.f32 %v363, %v573
        %575 = vmatprep.mubr.bf16.mxu0 %v494
        %576 = vmatmul.mubr.bf16.gmra.mxu0 %v316
        %v577 = vpop.f32.mrf.mxu0
        %v578 = vadd.f32 %v359, %v577
        %v579 = vpop.f32.mrf.mxu0
        %v580 = vadd.f32 %v363, %v579
        %v581 = vpop.f32.mrf.mxu0
        %v582 = vadd.f32 %v359, %v581
        %v583 = vpop.f32.mrf.mxu0
        %v584 = vadd.f32 %v363, %v583
        %585 = vmatprep.mubr.bf16.mxu0 %v496
        %586 = vmatmul.mubr.bf16.gmra.mxu0 %v320
        %v587 = vpop.f32.mrf.mxu0
        %v588 = vadd.f32 %v359, %v587
        %v589 = vpop.f32.mrf.mxu0
        %v590 = vadd.f32 %v363, %v589
        %v591 = vpop.f32.mrf.mxu0
        %v592 = vadd.f32 %v359, %v591
        %v593 = vpop.f32.mrf.mxu0
        %v594 = vadd.f32 %v363, %v593
        %595 = vmatprep.mubr.bf16.mxu0 %v499
        %596 = vmatmul.mubr.bf16.gmra.mxu0 %v324
        %v597 = vpop.f32.mrf.mxu0
        %v598 = vadd.f32 %v359, %v597
        %v599 = vpop.f32.mrf.mxu0
        %v600 = vadd.f32 %v363, %v599
        %v601 = vpop.f32.mrf.mxu0
        %v602 = vadd.f32 %v359, %v601
        %v603 = vpop.f32.mrf.mxu0
        %v604 = vadd.f32 %v363, %v603
        %605 = vmatprep.mubr.bf16.mxu0 %v501
        %606 = vmatmul.mubr.bf16.gmra.mxu0 %v328
        %v607 = vpop.f32.mrf.mxu0
        %v608 = vadd.f32 %v359, %v607
        %v609 = vpop.f32.mrf.mxu0
        %v610 = vadd.f32 %v363, %v609
        %v611 = vpop.f32.mrf.mxu0
        %v612 = vadd.f32 %v359, %v611
        %v613 = vpop.f32.mrf.mxu0
        %v614 = vadd.f32 %v363, %v613
        %615 = vdwg.mxu0
        %v616 = vsub.f32 0.0, %v540
        %v617 = vsub.f32 0.0, %v544
        %v618 = vsub.f32 0.0, %v550
        %v619 = vsub.f32 0.0, %v554
        %v620 = vsub.f32 0.0, %v560
        %v621 = vsub.f32 0.0, %v564
        %v622 = vsub.f32 0.0, %v570
        %v623 = vsub.f32 0.0, %v574
        %v624 = vsub.f32 0.0, %v580
        %v625 = vsub.f32 0.0, %v584
        %v626 = vsub.f32 0.0, %v590
        %v627 = vsub.f32 0.0, %v594
        %v628 = vsub.f32 0.0, %v600
        %v629 = vsub.f32 0.0, %v604
        %v630 = vsub.f32 0.0, %v610
        %v631 = vsub.f32 0.0, %v614
        %v632 = vmul.f32 %v616, 1.442695
        %v633 = vpow.pop %v632
        %v634 = vmul.f32 %v617, 1.442695
        %v635 = vpow.pop %v634
        %v636 = vmul.f32 %v618, 1.442695
        %v637 = vpow.pop %v636
        %v638 = vmul.f32 %v619, 1.442695
        %v639 = vpow.pop %v638
        %v640 = vmul.f32 %v620, 1.442695
        %v641 = vpow.pop %v640
        %v642 = vmul.f32 %v621, 1.442695
        %v643 = vpow.pop %v642
        %v644 = vmul.f32 %v622, 1.442695
        %v645 = vpow.pop %v644
        %v646 = vmul.f32 %v623, 1.442695
        %v647 = vpow.pop %v646
        %v648 = vmul.f32 %v624, 1.442695
        %v649 = vpow.pop %v648
        %v650 = vmul.f32 %v625, 1.442695
        %v651 = vpow.pop %v650
        %v652 = vmul.f32 %v626, 1.442695
        %v653 = vpow.pop %v652
        %v654 = vmul.f32 %v627, 1.442695
        %v655 = vpow.pop %v654
        %v656 = vmul.f32 %v628, 1.442695
        %v657 = vpow.pop %v656
        %v658 = vmul.f32 %v629, 1.442695
        %v659 = vpow.pop %v658
        %v660 = vmul.f32 %v630, 1.442695
        %v661 = vpow.pop %v660
        %v662 = vmul.f32 %v631, 1.442695
        %v663 = vpow.pop %v662
        %v664 = vadd.f32 %v633, 1.0
        %v665 = vadd.f32 %v635, 1.0
        %v666 = vadd.f32 %v637, 1.0
        %v667 = vadd.f32 %v639, 1.0
        %v668 = vadd.f32 %v641, 1.0
        %v669 = vadd.f32 %v643, 1.0
        %v670 = vadd.f32 %v645, 1.0
        %v671 = vadd.f32 %v647, 1.0
        %v672 = vadd.f32 %v649, 1.0
        %v673 = vadd.f32 %v651, 1.0
        %v674 = vadd.f32 %v653, 1.0
        %v675 = vadd.f32 %v655, 1.0
        %v676 = vadd.f32 %v657, 1.0
        %v677 = vadd.f32 %v659, 1.0
        %v678 = vadd.f32 %v661, 1.0
        %v679 = vadd.f32 %v663, 1.0
        %v680 = vrcp.pop %v664
        %v681 = vrcp.pop %v665
        %v682 = vrcp.pop %v666
        %v683 = vrcp.pop %v667
        %v684 = vrcp.pop %v668
        %v685 = vrcp.pop %v669
        %v686 = vrcp.pop %v670
        %v687 = vrcp.pop %v671
        %v688 = vrcp.pop %v672
        %v689 = vrcp.pop %v673
        %v690 = vrcp.pop %v674
        %v691 = vrcp.pop %v675
        %v692 = vrcp.pop %v676
        %v693 = vrcp.pop %v677
        %v694 = vrcp.pop %v678
        %v695 = vrcp.pop %v679
        %v696 = vmul.f32 %v538, %v680
        %v697 = vmul.f32 %v542, %v681
        %v698 = vmul.f32 %v548, %v682
        %v699 = vmul.f32 %v552, %v683
        %v700 = vmul.f32 %v558, %v684
        %v701 = vmul.f32 %v562, %v685
        %v702 = vmul.f32 %v568, %v686
        %v703 = vmul.f32 %v572, %v687
        %v704 = vmul.f32 %v578, %v688
        %v705 = vmul.f32 %v582, %v689
        %v706 = vmul.f32 %v588, %v690
        %v707 = vmul.f32 %v592, %v691
        %v708 = vmul.f32 %v598, %v692
        %v709 = vmul.f32 %v602, %v693
        %v710 = vmul.f32 %v608, %v694
        %v711 = vmul.f32 %v612, %v695
        %v712 = vunpack.c.l.bf16 %v225
        %v713 = vunpack.c.l.bf16 %v226
        %v714 = vunpack.c.l.bf16 %v227
        %v715 = vunpack.c.l.bf16 %v228
        %v716 = vunpack.c.l.bf16 %v229
        %v717 = vunpack.c.l.bf16 %v230
        %v718 = vunpack.c.l.bf16 %v231
        %v719 = vunpack.c.l.bf16 %v232
        %v720 = vunpack.c.l.bf16 %v233
        %v721 = vunpack.c.l.bf16 %v234
        %v722 = vunpack.c.l.bf16 %v235
        %v723 = vunpack.c.l.bf16 %v236
        %v724 = vunpack.c.l.bf16 %v237
        %v725 = vunpack.c.l.bf16 %v238
        %v726 = vunpack.c.l.bf16 %v239
        %v727 = vunpack.c.l.bf16 %v240
        %v728 = vsel %vm297, %v712, 0.0
        %v729 = vsel %vm297, %v713, 0.0
        %v730 = vsel %vm297, %v714, 0.0
        %v731 = vsel %vm297, %v715, 0.0
        %v732 = vsel %vm297, %v716, 0.0
        %v733 = vsel %vm297, %v717, 0.0
        %v734 = vsel %vm297, %v718, 0.0
        %v735 = vsel %vm297, %v719, 0.0
        %v736 = vsel %vm297, %v720, 0.0
        %v737 = vsel %vm297, %v721, 0.0
        %v738 = vsel %vm297, %v722, 0.0
        %v739 = vsel %vm297, %v723, 0.0
        %v740 = vsel %vm297, %v724, 0.0
        %v741 = vsel %vm297, %v725, 0.0
        %v742 = vsel %vm297, %v726, 0.0
        %v743 = vsel %vm297, %v727, 0.0
        %v744 = vadd.f32 %v696, %v728
        %v745 = vadd.f32 %v697, %v729
        %v746 = vadd.f32 %v698, %v730
        %v747 = vadd.f32 %v699, %v731
        %v748 = vadd.f32 %v700, %v732
        %v749 = vadd.f32 %v701, %v733
        %v750 = vadd.f32 %v702, %v734
        %v751 = vadd.f32 %v703, %v735
        %v752 = vadd.f32 %v704, %v736
        %v753 = vadd.f32 %v705, %v737
        %v754 = vadd.f32 %v706, %v738
        %v755 = vadd.f32 %v707, %v739
        %v756 = vadd.f32 %v708, %v740
        %v757 = vadd.f32 %v709, %v741
        %v758 = vadd.f32 %v710, %v742
        %v759 = vadd.f32 %v711, %v743
        %v760 = vmul.f32 %v744, 0.70710677
        %v761 = vmul.f32 %v745, 0.70710677
        %v762 = vmul.f32 %v746, 0.70710677
        %v763 = vmul.f32 %v747, 0.70710677
        %v764 = vmul.f32 %v748, 0.70710677
        %v765 = vmul.f32 %v749, 0.70710677
        %v766 = vmul.f32 %v750, 0.70710677
        %v767 = vmul.f32 %v751, 0.70710677
        %v768 = vmul.f32 %v752, 0.70710677
        %v769 = vmul.f32 %v753, 0.70710677
        %v770 = vmul.f32 %v754, 0.70710677
        %v771 = vmul.f32 %v755, 0.70710677
        %v772 = vmul.f32 %v756, 0.70710677
        %v773 = vmul.f32 %v757, 0.70710677
        %v774 = vmul.f32 %v758, 0.70710677
        %v775 = vmul.f32 %v759, 0.70710677
        %v776 = vpack.c.bf16 %v761, %v760
        %v777 = vpack.c.bf16 %v763, %v762
        %v778 = vpack.c.bf16 %v765, %v764
        %v779 = vpack.c.bf16 %v767, %v766
        %v780 = vpack.c.bf16 %v769, %v768
        %v781 = vpack.c.bf16 %v771, %v770
        %v782 = vpack.c.bf16 %v773, %v772
        %v783 = vpack.c.bf16 %v775, %v774
        %v792 = vunpack.c.l.b16 %v776
        %v793 = vunpack.c.h.b16 %v776
        %v794 = vunpack.c.l.b16 %v777
        %v795 = vunpack.c.h.b16 %v777
        %v796 = vunpack.c.l.b16 %v778
        %v797 = vunpack.c.h.b16 %v778
        %v798 = vunpack.c.l.b16 %v779
        %v799 = vunpack.c.h.b16 %v779
        %v800 = vunpack.c.l.b16 %v780
        %v801 = vunpack.c.h.b16 %v780
        %v802 = vunpack.c.l.b16 %v781
        %v803 = vunpack.c.h.b16 %v781
        %v804 = vunpack.c.l.b16 %v782
        %v805 = vunpack.c.h.b16 %v782
        %v806 = vunpack.c.l.b16 %v783
        %v807 = vunpack.c.h.b16 %v783
        %v808 = vpack.c.b16 %v792, %v792
        %v809 = vpack.c.b16 %v793, %v793
        %v810 = vpack.c.b16 %v794, %v794
        %v811 = vpack.c.b16 %v795, %v795
        %v812 = vpack.c.b16 %v796, %v796
        %v813 = vpack.c.b16 %v797, %v797
        %v814 = vpack.c.b16 %v798, %v798
        %v815 = vpack.c.b16 %v799, %v799
        %v816 = vpack.c.b16 %v800, %v800
        %v817 = vpack.c.b16 %v801, %v801
        %v818 = vpack.c.b16 %v802, %v802
        %v819 = vpack.c.b16 %v803, %v803
        %v820 = vpack.c.b16 %v804, %v804
        %v821 = vpack.c.b16 %v805, %v805
        %v822 = vpack.c.b16 %v806, %v806
        %v823 = vpack.c.b16 %v807, %v807
        %840 = vst [vmem:[%s221] sm:$0xf] %v808
        %841 = vst [vmem:[%s221 + $0x4] sm:$0xf] %v809
        %842 = vst [vmem:[%s221 + $0x8] sm:$0xf] %v810
        %843 = vst [vmem:[%s221 + $0xc] sm:$0xf] %v811
        %844 = vst [vmem:[%s221 + $0x10] sm:$0xf] %v812
        %845 = vst [vmem:[%s221 + $0x14] sm:$0xf] %v813
        %846 = vst [vmem:[%s221 + $0x18] sm:$0xf] %v814
        %847 = vst [vmem:[%s221 + $0x1c] sm:$0xf] %v815
        %848 = vst [vmem:[%s221 + $0x20] sm:$0xf] %v816
        %849 = vst [vmem:[%s221 + $0x24] sm:$0xf] %v817
        %850 = vst [vmem:[%s221 + $0x28] sm:$0xf] %v818
        %851 = vst [vmem:[%s221 + $0x2c] sm:$0xf] %v819
        %852 = vst [vmem:[%s221 + $0x30] sm:$0xf] %v820
        %853 = vst [vmem:[%s221 + $0x34] sm:$0xf] %v821
        %854 = vst [vmem:[%s221 + $0x38] sm:$0xf] %v822
        %855 = vst [vmem:[%s221 + $0x3c] sm:$0xf] %v823
        %s856 = sand.u32 %s113, 1
        %s857 = scalar_lea.sflag [#allocation4], %s856
        %s858 = sand.u32 %s113, 1
        %s859 = smul.addr %s858, 64
        %s860 = scalar_lea.vmem [#allocation7], %s859
        // Predicated region
        $region41: #{tpu_custom_call.1} parent=31 // pred_check
          %p861 = pneg %p123
        $region42: #{tpu_custom_call.1} parent=31 // pred_check_branch
          %863 = sbr.rel (%p861) target = $region44
        $region43: #{tpu_custom_call.1} parent=31 // pred_region
          %s864 = smul.u32 2, %s26
          %s866 = ssub.s32 1024, 1024
          %867 = vsyncadd %s857, %s866
          %s868 = smul.addr %s25, 16
          %s869 = sadd.s32 %s864, %s868
          %s870 = smul.addr %s869, 64
          %s871 = scalar_lea.hbm %s3, %s870
          %s872 = sshll.u32 %s860, 4
          %s873 = int_to_ptr.vmem [resolvable:$true] %s872
          %878 = dma.vmem_to_hbm [thread:$0]  %s873, 1024, %s871, %s857, 64, 64, 4
        $region44: #{tpu_custom_call.1} parent=31 // pred_fallthru
          _
      $region32: #{tpu_custom_call.1} parent=5 // pred_fallthru
        _
      %p879 = scmp.le.s32.totalorder 2, %s16
      // Predicated region
      $region45: #{tpu_custom_call.1} parent=5 // pred_check
        %p880 = pneg %p879
      $region46: #{tpu_custom_call.1} parent=5 // pred_check_branch
        %882 = sbr.rel (%p880) target = $region48
      $region47: #{tpu_custom_call.1} parent=5 // pred_region
        %s883 = ssub.s32 %s16, 2
        // Predicated region
        $region49: #{tpu_custom_call.1} parent=47 // pred_check
          %p884 = pneg %p129
        $region50: #{tpu_custom_call.1} parent=47 // pred_check_branch
          %886 = sbr.rel (%p884) target = $region52
        $region51: #{tpu_custom_call.1} parent=47 // pred_region
          %s887 = sand.u32 %s114, 1
          %s888 = scalar_lea.sflag [#allocation4], %s887
          %s889 = sand.u32 %s114, 1
          %s890 = smul.addr %s889, 64
          %s891 = scalar_lea.vmem [#allocation7], %s890
          %892 = dma.done %s888, 1024
        $region52: #{tpu_custom_call.1} parent=47 // pred_fallthru
          _
      $region48: #{tpu_custom_call.1} parent=5 // pred_fallthru
        _
    $region6: #{tpu_custom_call.1} parent=1 // loop_footer
      %s20 = sadd.s32 1, %s16
    $region7: #{tpu_custom_call.1} parent=1 // loop_footer_branch
      %15 = sbr.rel target = $region3
    $region8: #{tpu_custom_call.1} parent=1 // loop_exit
      _
    %893 = vsyncpa [#allocation3], 1
    %s894 = scalar_lea.sflag [#allocation3], 1
    %895 = vsyncpa %s894, 1
    %896 = vsyncpa [#allocation6], 1
    %897 = vsyncpa [#allocation4], 1
    %s898 = scalar_lea.sflag [#allocation4], 1
    %899 = vsyncpa %s898, 1

</llo_original>
